<compile_context>
chip_gen: v6e
topology: v6e:2x2x1
jax: 0.10.0
libtpu: 0.0.40
codegen_flags: <defaults>
</compile_context>

<pallas_src>
import jax
import jax.numpy as jnp
from jax.experimental import pallas as pl
from jax.experimental.pallas import tpu as pltpu


HIDDEN = 256              # per-head hidden width; fused width = 2 * HIDDEN


def _round_up(x, m):
    return ((x + m - 1) // m) * m


def _critic_kernel(s_ref, a_ref, w1s_ref, w1a_ref, w2_ref, w3_ref, b_ref, q_ref):
    """Fused twin-Q MLP forward on one batch tile (4 matmuls total)."""
    H2 = 2 * HIDDEN
    cdt = w1s_ref.dtype                      # compute dtype (f32 or bf16)

    s = s_ref[...].astype(cdt)
    a = a_ref[...].astype(cdt)

    # Packed biases (f32): [b1_fused(512) | b2_fused(512) | b3_fused(2)]
    b1 = b_ref[:, 0:H2]
    b2 = b_ref[:, H2:2 * H2]
    b3 = b_ref[:, 2 * H2:2 * H2 + 2]

    # Layer 1, both heads fused along N: (B, 512).  The sa concat is replaced
    # by two matmuls against the row-split weight.
    h = (jnp.dot(s, w1s_ref[...], preferred_element_type=jnp.float32)
         + jnp.dot(a, w1a_ref[...], preferred_element_type=jnp.float32)
         + b1)
    h = jnp.maximum(h, 0.0)

    # Layer 2, block-diagonal fused weight: one (512, 512) matmul.
    h = jnp.dot(h.astype(cdt), w2_ref[...], preferred_element_type=jnp.float32) + b2
    h = jnp.maximum(h, 0.0)

    # Layer 3, fused heads: (512, 2) weight -> (B, 2); col 0 = q1, col 1 = q2.
    q = jnp.dot(h.astype(cdt), w3_ref[...], preferred_element_type=jnp.float32) + b3
    q_ref[...] = q.astype(q_ref.dtype)


def critic_forward(s, a, packed, *, tile_b=256):
    """Twin-Q forward. Returns (q1, q2), each of shape (B, 1) float32."""
    w1s, w1a, w2, w3, b = packed
    B, state_dim = s.shape
    action_dim = a.shape[1]
    H2 = 2 * HIDDEN

    # Batch tiling: tile rows must be a multiple of 8 (sublane); pad ragged B.
    tb = min(tile_b, _round_up(B, 8))
    Bp = _round_up(B, tb)
    if Bp != B:
        pad = ((0, Bp - B), (0, 0))
        s = jnp.pad(s, pad)
        a = jnp.pad(a, pad)

    grid = (Bp // tb,)

    q = pl.pallas_call(
        _critic_kernel,
        out_shape=jax.ShapeDtypeStruct((Bp, 2), jnp.float32),
        grid_spec=pltpu.PrefetchScalarGridSpec(
            num_scalar_prefetch=0,
            grid=grid,
            in_specs=[
                pl.BlockSpec((tb, state_dim), lambda i: (i, 0)),     # s tile
                pl.BlockSpec((tb, action_dim), lambda i: (i, 0)),    # a tile
                pl.BlockSpec((state_dim, H2), lambda i: (0, 0)),     # W1_s (resident)
                pl.BlockSpec((action_dim, H2), lambda i: (0, 0)),    # W1_a (resident)
                pl.BlockSpec((H2, H2), lambda i: (0, 0)),            # W2 block-diag
                pl.BlockSpec((H2, 2), lambda i: (0, 0)),             # W3 fused heads
                pl.BlockSpec((1, 2 * H2 + 2), lambda i: (0, 0)),     # packed biases
            ],
            out_specs=pl.BlockSpec((tb, 2), lambda i: (i, 0)),
        ),
        compiler_params=pltpu.CompilerParams(
            dimension_semantics=("parallel",)),
    )(s, a, w1s, w1a, w2, w3, b)

    q = q[:B]
    return q[:, 0:1], q[:, 1:2]


def init_critic_params(key, state_dim, action_dim, hidden=HIDDEN):
    """Per-head params, PyTorch-like uniform(+-1/sqrt(fan_in)) init.

    Weights stored as (in, out) = W_pt.T; biases as (1, out).
    Returned order: (w1a,b1a,w2a,b2a,w3a,b3a, w1b,b1b,w2b,b2b,w3b,b3b).
    """
    dims = [(state_dim + action_dim, hidden), (hidden, hidden), (hidden, 1)]
    raw = []
    for _head in range(2):
        for fin, fout in dims:
            key, kw, kb = jax.random.split(key, 3)
            bound = 1.0 / (fin ** 0.5)
            w = jax.random.uniform(kw, (fin, fout), jnp.float32, -bound, bound)
            b = jax.random.uniform(kb, (1, fout), jnp.float32, -bound, bound)
            raw.extend([w, b])
    return tuple(raw)


def pack_critic_params(raw, state_dim, *, compute_dtype=jnp.float32, hidden=HIDDEN):
    """Pack per-head params into the fused kernel layout (5 tensors)."""
    (w1a, b1a, w2a, b2a, w3a, b3a,
     w1b, b1b, w2b, b2b, w3b, b3b) = raw

    # Layer 1: heads fused along output dim, rows split by s / a.
    w1 = jnp.concatenate([w1a, w1b], axis=1)                 # (S+A, 512)
    w1_s = w1[:state_dim].astype(compute_dtype)              # (S, 512)
    w1_a = w1[state_dim:].astype(compute_dtype)              # (A, 512)

    # Layer 2: block-diagonal so the heads stay independent in one matmul.
    z = jnp.zeros((hidden, hidden), jnp.float32)
    w2 = jnp.block([[w2a, z], [z, w2b]]).astype(compute_dtype)   # (512, 512)

    # Layer 3: stacked columns -> (512, 2); col 0 = q1, col 1 = q2.
    z1 = jnp.zeros((hidden, 1), jnp.float32)
    w3 = jnp.block([[w3a, z1], [z1, w3b]]).astype(compute_dtype)  # (512, 2)

    # Biases packed into one f32 buffer (kept f32 for exact accumulation).
    b = jnp.concatenate([b1a, b1b, b2a, b2b, b3a, b3b], axis=1)   # (1, 1026)

    return (w1_s, w1_a, w2, w3, b)


def critic_reference(s, a, raw):
    """Pure-JAX reference (unfused, per head) for correctness checks."""
    sa = jnp.concatenate([s, a], axis=-1)
    (w1a, b1a, w2a, b2a, w3a, b3a,
     w1b, b1b, w2b, b2b, w3b, b3b) = raw

    def head(x, w1, b1, w2, b2, w3, b3):
        h = jnp.maximum(x @ w1 + b1, 0.0)
        h = jnp.maximum(h @ w2 + b2, 0.0)
        return h @ w3 + b3

    return (head(sa, w1a, b1a, w2a, b2a, w3a, b3a),
            head(sa, w1b, b1b, w2b, b2b, w3b, b3b))


if __name__ == "__main__":
    key = jax.random.PRNGKey(0)
    state_dim, action_dim = 17, 6

    kp, ks, ka = jax.random.split(key, 3)
    raw = init_critic_params(kp, state_dim, action_dim)
    fwd = jax.jit(critic_forward)

    # --- small batch, f32 compute (exact vs reference) ---------------------
    B = 8
    s = jax.random.normal(ks, (B, state_dim), jnp.float32)
    a = jax.random.normal(ka, (B, action_dim), jnp.float32)
    packed_f32 = pack_critic_params(raw, state_dim, compute_dtype=jnp.float32)

    q1, q2 = fwd(s, a, packed_f32)
    jax.block_until_ready((q1, q2))
    r1, r2 = critic_reference(s, a, raw)
    assert q1.shape == (B, 1) and q2.shape == (B, 1)
    assert jnp.allclose(q1, r1, atol=1e-4, rtol=1e-4)
    assert jnp.allclose(q2, r2, atol=1e-4, rtol=1e-4)

    # --- larger ragged batch exercising the B-grid (tile_b=256, grid=3) ----
    B2 = 600
    ks2, ka2 = jax.random.split(jax.random.PRNGKey(1))
    s2 = jax.random.normal(ks2, (B2, state_dim), jnp.float32)
    a2 = jax.random.normal(ka2, (B2, action_dim), jnp.float32)
    q1b, q2b = fwd(s2, a2, packed_f32)
    jax.block_until_ready((q1b, q2b))
    r1b, r2b = critic_reference(s2, a2, raw)
    assert q1b.shape == (B2, 1) and q2b.shape == (B2, 1)
    assert jnp.allclose(q1b, r1b, atol=1e-4, rtol=1e-4)
    assert jnp.allclose(q2b, r2b, atol=1e-4, rtol=1e-4)

    # --- bf16 operands / f32 accumulate (v5e / v6e MXU-friendly path) ------
    packed_bf16 = pack_critic_params(raw, state_dim, compute_dtype=jnp.bfloat16)
    q1c, q2c = fwd(s2, a2, packed_bf16)
    jax.block_until_ready((q1c, q2c))
    assert jnp.allclose(q1c, r1b, atol=0.15, rtol=0.05)
    assert jnp.allclose(q2c, r2b, atol=0.15, rtol=0.05)

    print("KERNEL_OK")
</pallas_src>

<mosaic_0001>
module attributes {stable_mosaic.version = 11 : i64} {
  func.func @_critic_kernel(%arg0: i32, %arg1: memref<8x17xf32, #tpu.memory_space<vmem>>, %arg2: memref<8x6xf32, #tpu.memory_space<vmem>>, %arg3: memref<17x512xf32, #tpu.memory_space<vmem>>, %arg4: memref<6x512xf32, #tpu.memory_space<vmem>>, %arg5: memref<512x512xf32, #tpu.memory_space<vmem>>, %arg6: memref<512x2xf32, #tpu.memory_space<vmem>>, %arg7: memref<1x1026xf32, #tpu.memory_space<vmem>>, %arg8: memref<8x2xf32, #tpu.memory_space<vmem>>) attributes {dimension_semantics = [#tpu.dimension_semantics<parallel>], iteration_bounds = array<i64: 1>, scalar_prefetch = 0 : i64, scratch_operands = 0 : i64, tpu.core_type = #tpu.core_type<tc>, window_params = [{transform_indices = @transform_0, window_bounds = array<i64: 8, 17>}, {transform_indices = @transform_1, window_bounds = array<i64: 8, 6>}, {pipeline_mode = #tpu.pipeline_mode<synchronous>, transform_indices = @transform_2, window_bounds = array<i64: 17, 512>}, {pipeline_mode = #tpu.pipeline_mode<synchronous>, transform_indices = @transform_3, window_bounds = array<i64: 6, 512>}, {pipeline_mode = #tpu.pipeline_mode<synchronous>, transform_indices = @transform_4, window_bounds = array<i64: 512, 512>}, {pipeline_mode = #tpu.pipeline_mode<synchronous>, transform_indices = @transform_5, window_bounds = array<i64: 512, 2>}, {pipeline_mode = #tpu.pipeline_mode<synchronous>, transform_indices = @transform_6, window_bounds = array<i64: 1, 1026>}, {transform_indices = @transform_7, window_bounds = array<i64: 8, 2>}]} {
    %c0 = arith.constant 0 : index
    %c0_0 = arith.constant 0 : index
    %0 = vector.load %arg1[%c0, %c0_0] : memref<8x17xf32, #tpu.memory_space<vmem>>, vector<8x17xf32>
    %c0_1 = arith.constant 0 : index
    %c0_2 = arith.constant 0 : index
    %1 = vector.load %arg2[%c0_1, %c0_2] : memref<8x6xf32, #tpu.memory_space<vmem>>, vector<8x6xf32>
    %c0_3 = arith.constant 0 : index
    %c0_4 = arith.constant 0 : index
    %2 = vector.load %arg7[%c0_3, %c0_4] : memref<1x1026xf32, #tpu.memory_space<vmem>>, vector<1x512xf32>
    %c0_5 = arith.constant 0 : index
    %c512 = arith.constant 512 : index
    %3 = vector.load %arg7[%c0_5, %c512] : memref<1x1026xf32, #tpu.memory_space<vmem>>, vector<1x512xf32>
    %c0_6 = arith.constant 0 : index
    %c1024 = arith.constant 1024 : index
    %4 = vector.load %arg7[%c0_6, %c1024] : memref<1x1026xf32, #tpu.memory_space<vmem>>, vector<1x2xf32>
    %c0_7 = arith.constant 0 : index
    %c0_8 = arith.constant 0 : index
    %5 = vector.load %arg3[%c0_7, %c0_8] : memref<17x512xf32, #tpu.memory_space<vmem>>, vector<17x512xf32>
    %cst = arith.constant dense<0.000000e+00> : vector<8x512xf32>
    %6 = tpu.matmul %0, %5, %cst {dimension_numbers = #tpu.dot_dimension_numbers<[1], [0], [0], [1], [0, 0, 1, 1], [], []>} : vector<8x17xf32>, vector<17x512xf32>, vector<8x512xf32> -> vector<8x512xf32>
    %c0_9 = arith.constant 0 : index
    %c0_10 = arith.constant 0 : index
    %7 = vector.load %arg4[%c0_9, %c0_10] : memref<6x512xf32, #tpu.memory_space<vmem>>, vector<6x512xf32>
    %cst_11 = arith.constant dense<0.000000e+00> : vector<8x512xf32>
    %8 = tpu.matmul %1, %7, %cst_11 {dimension_numbers = #tpu.dot_dimension_numbers<[1], [0], [0], [1], [0, 0, 1, 1], [], []>} : vector<8x6xf32>, vector<6x512xf32>, vector<8x512xf32> -> vector<8x512xf32>
    %9 = arith.addf %6, %8 : vector<8x512xf32>
    %10 = vector.broadcast %2 : vector<1x512xf32> to vector<8x512xf32>
    %11 = arith.addf %9, %10 : vector<8x512xf32>
    %cst_12 = arith.constant 0.000000e+00 : f32
    %12 = vector.broadcast %cst_12 : f32 to vector<8x512xf32>
    %13 = arith.maximumf %11, %12 : vector<8x512xf32>
    %c0_13 = arith.constant 0 : index
    %c0_14 = arith.constant 0 : index
    %14 = vector.load %arg5[%c0_13, %c0_14] : memref<512x512xf32, #tpu.memory_space<vmem>>, vector<512x512xf32>
    %cst_15 = arith.constant dense<0.000000e+00> : vector<8x512xf32>
    %15 = tpu.matmul %13, %14, %cst_15 {dimension_numbers = #tpu.dot_dimension_numbers<[1], [0], [0], [1], [0, 0, 1, 1], [], []>} : vector<8x512xf32>, vector<512x512xf32>, vector<8x512xf32> -> vector<8x512xf32>
    %16 = vector.broadcast %3 : vector<1x512xf32> to vector<8x512xf32>
    %17 = arith.addf %15, %16 : vector<8x512xf32>
    %cst_16 = arith.constant 0.000000e+00 : f32
    %18 = vector.broadcast %cst_16 : f32 to vector<8x512xf32>
    %19 = arith.maximumf %17, %18 : vector<8x512xf32>
    %c0_17 = arith.constant 0 : index
    %c0_18 = arith.constant 0 : index
    %20 = vector.load %arg6[%c0_17, %c0_18] : memref<512x2xf32, #tpu.memory_space<vmem>>, vector<512x2xf32>
    %cst_19 = arith.constant dense<0.000000e+00> : vector<8x2xf32>
    %21 = tpu.matmul %19, %20, %cst_19 {dimension_numbers = #tpu.dot_dimension_numbers<[1], [0], [0], [1], [0, 0, 1, 1], [], []>} : vector<8x512xf32>, vector<512x2xf32>, vector<8x2xf32> -> vector<8x2xf32>
    %22 = vector.broadcast %4 : vector<1x2xf32> to vector<8x2xf32>
    %23 = arith.addf %21, %22 : vector<8x2xf32>
    %c0_20 = arith.constant 0 : index
    %c0_21 = arith.constant 0 : index
    %24 = vector.load %arg8[%c0_20, %c0_21] : memref<8x2xf32, #tpu.memory_space<vmem>>, vector<8x2xf32>
    tpu.vector_store %arg8[%c0_20, %c0_21], %23 {strides = array<i32>} : memref<8x2xf32, #tpu.memory_space<vmem>>, vector<8x2xf32>,
    return
  }
  func.func @transform_0(%arg0: i32) -> (i32, i32) {
    %c0_i32 = arith.constant 0 : i32
    %c0_i32_0 = arith.constant 0 : i32
    return %arg0, %c0_i32 : i32, i32
  }
  func.func @transform_1(%arg0: i32) -> (i32, i32) {
    %c0_i32 = arith.constant 0 : i32
    %c0_i32_0 = arith.constant 0 : i32
    return %arg0, %c0_i32 : i32, i32
  }
  func.func @transform_2(%arg0: i32) -> (i32, i32) {
    %c0_i32 = arith.constant 0 : i32
    %c0_i32_0 = arith.constant 0 : i32
    %c0_i32_1 = arith.constant 0 : i32
    return %c0_i32, %c0_i32_0 : i32, i32
  }
  func.func @transform_3(%arg0: i32) -> (i32, i32) {
    %c0_i32 = arith.constant 0 : i32
    %c0_i32_0 = arith.constant 0 : i32
    %c0_i32_1 = arith.constant 0 : i32
    return %c0_i32, %c0_i32_0 : i32, i32
  }
  func.func @transform_4(%arg0: i32) -> (i32, i32) {
    %c0_i32 = arith.constant 0 : i32
    %c0_i32_0 = arith.constant 0 : i32
    %c0_i32_1 = arith.constant 0 : i32
    return %c0_i32, %c0_i32_0 : i32, i32
  }
  func.func @transform_5(%arg0: i32) -> (i32, i32) {
    %c0_i32 = arith.constant 0 : i32
    %c0_i32_0 = arith.constant 0 : i32
    %c0_i32_1 = arith.constant 0 : i32
    return %c0_i32, %c0_i32_0 : i32, i32
  }
  func.func @transform_6(%arg0: i32) -> (i32, i32) {
    %c0_i32 = arith.constant 0 : i32
    %c0_i32_0 = arith.constant 0 : i32
    %c0_i32_1 = arith.constant 0 : i32
    return %c0_i32, %c0_i32_0 : i32, i32
  }
  func.func @transform_7(%arg0: i32) -> (i32, i32) {
    %c0_i32 = arith.constant 0 : i32
    %c0_i32_0 = arith.constant 0 : i32
    return %arg0, %c0_i32 : i32, i32
  }
}

</mosaic_0001>

<llo_original>
// kernel: critic_forward.1
$region0: #{critic_forward.1}
  #allocation0 [shape = 'u32[]', space=smem, size = 0x4, offset = 0x4, fixed_abs, tag = 'smem constant byte address 0x4 - core index']
  #allocation1 [shape = 'u32[144,128]{1,0:T(1,128)}', space=vmem, size = 0x12000, scoped, tag = 'internal scratch']
  %s0 = inlined_call_operand.vmem [shape: f32[8,17], index: 0, kind: input, shape index: {}]
  %s1 = inlined_call_operand.vmem [shape: f32[8,6], index: 1, kind: input, shape index: {}]
  %s2 = inlined_call_operand.vmem [shape: f32[17,512], index: 2, kind: input, shape index: {}]
  %s3 = inlined_call_operand.vmem [shape: f32[6,512], index: 3, kind: input, shape index: {}]
  %s4 = inlined_call_operand.hbm [shape: f32[512,512], index: 4, kind: input, shape index: {}]
  %s5 = inlined_call_operand.vmem [shape: f32[512,2], index: 5, kind: input, shape index: {}]
  %s6 = inlined_call_operand.vmem [shape: f32[1,1026], index: 6, kind: input, shape index: {}]
  %s7 = inlined_call_operand.vmem [shape: f32[8,2], index: 7, kind: output, shape index: {}]
  %s8 = sld [smem:[#allocation0]]
  $region42: #{critic_forward.1} parent=0
    _
  %s10 = ssub.s32 1, %s8
  %s11 = scalar_select 0, %s10, %s8
  $region1: #{critic_forward.1} parent=0
    #allocation2 [shape = 'u8[1048576]{0}', space=vmem, size = 0x100000, scoped, tag = 'input window, operand 4, single buffered']
    #allocation3 [shape = 's32[1]{0}', space=sflag, size = 0x4, scoped, tag = 'scoped memory for critic_forward.1']
    %12 = vsyncpa [#allocation3], 0
    // Predicated region
    $region2: #{critic_forward.1} parent=1 // pred_check
      _
    $region3: #{critic_forward.1} parent=1 // pred_check_branch
      %14 = sbr.rel (0) target = $region5
    $region4: #{critic_forward.1} parent=1 // pred_region
      _
    $region5: #{critic_forward.1} parent=1 // pred_fallthru
      _
    // Predicated region
    $region6: #{critic_forward.1} parent=1 // pred_check
      _
    $region7: #{critic_forward.1} parent=1 // pred_check_branch
      %16 = sbr.rel (0) target = $region9
    $region8: #{critic_forward.1} parent=1 // pred_region
      _
    $region9: #{critic_forward.1} parent=1 // pred_fallthru
      _
    // Predicated region
    $region10: #{critic_forward.1} parent=1 // pred_check
      _
    $region11: #{critic_forward.1} parent=1 // pred_check_branch
      %18 = sbr.rel (0) target = $region13
    $region12: #{critic_forward.1} parent=1 // pred_region
      _
    $region13: #{critic_forward.1} parent=1 // pred_fallthru
      _
    // Predicated region
    $region14: #{critic_forward.1} parent=1 // pred_check
      _
    $region15: #{critic_forward.1} parent=1 // pred_check_branch
      %20 = sbr.rel (0) target = $region17
    $region16: #{critic_forward.1} parent=1 // pred_region
      _
    $region17: #{critic_forward.1} parent=1 // pred_fallthru
      _
    // Predicated region
    $region18: #{critic_forward.1} parent=1 // pred_check
      _
    $region19: #{critic_forward.1} parent=1 // pred_check_branch
      %22 = sbr.rel (0) target = $region21
    $region20: #{critic_forward.1} parent=1 // pred_region
      %s24 = ssub.s32 32768, 32768
      %25 = vsyncadd [#allocation3], %s24
      %s26 = sshll.u32 [#allocation2], 4
      %s27 = int_to_ptr.vmem [resolvable:$true] %s26
      %32 = dma.hbm_to_vmem [thread:$0]  %s4, 32768, %s27, [#allocation3], 512, 512, 32
    $region21: #{critic_forward.1} parent=1 // pred_fallthru
      _
    // Predicated region
    $region22: #{critic_forward.1} parent=1 // pred_check
      _
    $region23: #{critic_forward.1} parent=1 // pred_check_branch
      %34 = sbr.rel (0) target = $region25
    $region24: #{critic_forward.1} parent=1 // pred_region
      _
    $region25: #{critic_forward.1} parent=1 // pred_fallthru
      _
    // Predicated region
    $region26: #{critic_forward.1} parent=1 // pred_check
      _
    $region27: #{critic_forward.1} parent=1 // pred_check_branch
      %36 = sbr.rel (0) target = $region29
    $region28: #{critic_forward.1} parent=1 // pred_region
      _
    $region29: #{critic_forward.1} parent=1 // pred_fallthru
      _
    // Predicated region
    $region30: #{critic_forward.1} parent=1 // pred_check
      _
    $region31: #{critic_forward.1} parent=1 // pred_check_branch
      %38 = sbr.rel (0) target = $region33
    $region32: #{critic_forward.1} parent=1 // pred_region
      %39 = dma.done [#allocation3], 32768
    $region33: #{critic_forward.1} parent=1 // pred_fallthru
      _
    %v40 = vld [vmem:[%s0] sm:$0xff]
    %v41 = vld [vmem:[%s1] sm:$0xff]
    %v42 = vld [vmem:[%s6] sm:$0xf]
    %v43 = vld [vmem:[%s6 + $0x4] sm:$0xf]
    %v44 = vld [vmem:[%s6 + $0x8] sm:$0x1]
    %v45 = vld [vmem:[%s2] sm:$0xff]
    %v46 = vld [vmem:[%s2 + $0x8] sm:$0xff]
    %v47 = vld [vmem:[%s2 + $0x10] sm:$0xff]
    %v48 = vld [vmem:[%s2 + $0x18] sm:$0xff]
    %v49 = vld [vmem:[%s2 + $0x20] sm:$0xff]
    %v50 = vld [vmem:[%s2 + $0x28] sm:$0xff]
    %v51 = vld [vmem:[%s2 + $0x30] sm:$0xff]
    %v52 = vld [vmem:[%s2 + $0x38] sm:$0xff]
    %v53 = vld [vmem:[%s2 + $0x40] sm:$0x1]
    %v54 = vld [vmem:[%s2 + $0x48] sm:$0x1]
    %v55 = vld [vmem:[%s2 + $0x50] sm:$0x1]
    %v56 = vld [vmem:[%s2 + $0x58] sm:$0x1]
    %v57 = vld [vmem:[%s3] sm:$0x3f]
    %v58 = vld [vmem:[%s3 + $0x8] sm:$0x3f]
    %v59 = vld [vmem:[%s3 + $0x10] sm:$0x3f]
    %v60 = vld [vmem:[%s3 + $0x18] sm:$0x3f]
    %vm61 = vcmask 48128
    %v63 = vsel %vm61, %v41, 0
    %vm65 = vcmask 1045504
    %v67 = vsel %vm65, %v57, 0
    %v70 = vsel %vm65, %v58, 0
    %v73 = vsel %vm65, %v59, 0
    %v76 = vsel %vm65, %v60, 0
    %78 = vmatprep.subr.mxu0 0.0
    %79 = vmatpush1.msra.mxu0 0.0
    %80 = vmatprep.subr.mxu0 0.0
    %81 = vmatpush1.msra.mxu0 0.0
    %82 = vmatprep.subr.mxu0 0.0
    %83 = vmatpush1.msra.mxu0 0.0
    %84 = vmatprep.subr.mxu0 0.0
    %85 = vmatpush1.msra.mxu0 0.0
    %86 = vmatprep.subr.mxu0 0.0
    %87 = vmatpush1.msra.mxu0 0.0
    %88 = vmatprep.subr.mxu0 0.0
    %89 = vmatpush1.msra.mxu0 0.0
    %90 = vmatprep.subr.mxu0 0.0
    %91 = vmatpush1.msra.mxu0 0.0
    %92 = vmatprep.subr.mxu0 0.0
    %93 = vmatpush1.msra.mxu0 0.0
    %94 = vmatprep.subr.mxu0 0.0
    %95 = vmatpush1.msra.mxu0 0.0
    %96 = vmatprep.subr.mxu0 0.0
    %97 = vmatpush1.msra.mxu0 0.0
    %98 = vmatprep.subr.mxu0 0.0
    %99 = vmatpush1.msra.mxu0 0.0
    %100 = vmatprep.subr.mxu0 0.0
    %101 = vmatpush1.msra.mxu0 0.0
    %102 = vmatprep.subr.mxu0 0.0
    %103 = vmatpush1.msra.mxu0 0.0
    %104 = vmatprep.subr.mxu0 0.0
    %105 = vmatpush1.msra.mxu0 0.0
    %106 = vmatprep.subr.mxu0 0.0
    %107 = vmatpush1.msra.mxu0 0.0
    %108 = vmatprep.subr.mxu0 %v70
    %109 = vmatpush1.msra.mxu0 %v67
    %110 = vmatprep.subr.mxu0 0.0
    %111 = vmatpush2.msra.mxu0 0.0
    %112 = vmatprep.subr.mxu0 0.0
    %113 = vmatpush2.msra.mxu0 0.0
    %114 = vmatprep.subr.mxu0 0.0
    %115 = vmatpush2.msra.mxu0 0.0
    %116 = vmatprep.subr.mxu0 0.0
    %117 = vmatpush2.msra.mxu0 0.0
    %118 = vmatprep.subr.mxu0 0.0
    %119 = vmatpush2.msra.mxu0 0.0
    %120 = vmatprep.subr.mxu0 0.0
    %121 = vmatpush2.msra.mxu0 0.0
    %122 = vmatprep.subr.mxu0 0.0
    %123 = vmatpush2.msra.mxu0 0.0
    %124 = vmatprep.subr.mxu0 0.0
    %125 = vmatpush2.msra.mxu0 0.0
    %126 = vmatprep.subr.mxu0 0.0
    %127 = vmatpush2.msra.mxu0 0.0
    %128 = vmatprep.subr.mxu0 0.0
    %129 = vmatpush2.msra.mxu0 0.0
    %130 = vmatprep.subr.mxu0 0.0
    %131 = vmatpush2.msra.mxu0 0.0
    %132 = vmatprep.subr.mxu0 0.0
    %133 = vmatpush2.msra.mxu0 0.0
    %134 = vmatprep.subr.mxu0 0.0
    %135 = vmatpush2.msra.mxu0 0.0
    %136 = vmatprep.subr.mxu0 0.0
    %137 = vmatpush2.msra.mxu0 0.0
    %138 = vmatprep.subr.mxu0 0.0
    %139 = vmatpush2.msra.mxu0 0.0
    %140 = vmatprep.subr.mxu0 0.0
    %141 = vmatpush2.msra.mxu0 0.0
    %142 = vmatprep.mubr.f32.mxu0 0.0
    %143 = vmatmul.mubr.f32.gmra.mxu0 %v63
    %v144 = vpop.f32.mrf.mxu0
    %v145 = vadd.f32 0.0, %v144
    %v146 = vpop.f32.mrf.mxu0
    %v147 = vadd.f32 0.0, %v146
    %148 = vdwg.mxu0
    %149 = vmatprep.subr.mxu0 0.0
    %150 = vmatpush1.msra.mxu0 0.0
    %151 = vmatprep.subr.mxu0 0.0
    %152 = vmatpush1.msra.mxu0 0.0
    %153 = vmatprep.subr.mxu0 0.0
    %154 = vmatpush1.msra.mxu0 0.0
    %155 = vmatprep.subr.mxu0 0.0
    %156 = vmatpush1.msra.mxu0 0.0
    %157 = vmatprep.subr.mxu0 0.0
    %158 = vmatpush1.msra.mxu0 0.0
    %159 = vmatprep.subr.mxu0 0.0
    %160 = vmatpush1.msra.mxu0 0.0
    %161 = vmatprep.subr.mxu0 0.0
    %162 = vmatpush1.msra.mxu0 0.0
    %163 = vmatprep.subr.mxu0 0.0
    %164 = vmatpush1.msra.mxu0 0.0
    %165 = vmatprep.subr.mxu0 0.0
    %166 = vmatpush1.msra.mxu0 0.0
    %167 = vmatprep.subr.mxu0 0.0
    %168 = vmatpush1.msra.mxu0 0.0
    %169 = vmatprep.subr.mxu0 0.0
    %170 = vmatpush1.msra.mxu0 0.0
    %171 = vmatprep.subr.mxu0 0.0
    %172 = vmatpush1.msra.mxu0 0.0
    %173 = vmatprep.subr.mxu0 0.0
    %174 = vmatpush1.msra.mxu0 0.0
    %175 = vmatprep.subr.mxu0 0.0
    %176 = vmatpush1.msra.mxu0 0.0
    %177 = vmatprep.subr.mxu0 0.0
    %178 = vmatpush1.msra.mxu0 0.0
    %179 = vmatprep.subr.mxu0 %v76
    %180 = vmatpush1.msra.mxu0 %v73
    %181 = vmatprep.subr.mxu0 0.0
    %182 = vmatpush2.msra.mxu0 0.0
    %183 = vmatprep.subr.mxu0 0.0
    %184 = vmatpush2.msra.mxu0 0.0
    %185 = vmatprep.subr.mxu0 0.0
    %186 = vmatpush2.msra.mxu0 0.0
    %187 = vmatprep.subr.mxu0 0.0
    %188 = vmatpush2.msra.mxu0 0.0
    %189 = vmatprep.subr.mxu0 0.0
    %190 = vmatpush2.msra.mxu0 0.0
    %191 = vmatprep.subr.mxu0 0.0
    %192 = vmatpush2.msra.mxu0 0.0
    %193 = vmatprep.subr.mxu0 0.0
    %194 = vmatpush2.msra.mxu0 0.0
    %195 = vmatprep.subr.mxu0 0.0
    %196 = vmatpush2.msra.mxu0 0.0
    %197 = vmatprep.subr.mxu0 0.0
    %198 = vmatpush2.msra.mxu0 0.0
    %199 = vmatprep.subr.mxu0 0.0
    %200 = vmatpush2.msra.mxu0 0.0
    %201 = vmatprep.subr.mxu0 0.0
    %202 = vmatpush2.msra.mxu0 0.0
    %203 = vmatprep.subr.mxu0 0.0
    %204 = vmatpush2.msra.mxu0 0.0
    %205 = vmatprep.subr.mxu0 0.0
    %206 = vmatpush2.msra.mxu0 0.0
    %207 = vmatprep.subr.mxu0 0.0
    %208 = vmatpush2.msra.mxu0 0.0
    %209 = vmatprep.subr.mxu0 0.0
    %210 = vmatpush2.msra.mxu0 0.0
    %211 = vmatprep.subr.mxu0 0.0
    %212 = vmatpush2.msra.mxu0 0.0
    %213 = vmatprep.mubr.f32.mxu0 0.0
    %214 = vmatmul.mubr.f32.gmra.mxu0 %v63
    %v215 = vpop.f32.mrf.mxu0
    %v216 = vadd.f32 0.0, %v215
    %v217 = vpop.f32.mrf.mxu0
    %v218 = vadd.f32 0.0, %v217
    %219 = vdwg.mxu0
    %vm220 = vcmask 138240
    %v222 = vsel %vm220, %v40, 0
    %vm224 = vcmask 1040384
    %v226 = vsel %vm224, %v53, 0
    %v229 = vsel %vm224, %v54, 0
    %v232 = vsel %vm224, %v55, 0
    %v235 = vsel %vm224, %v56, 0
    %237 = vmatprep.subr.mxu0 0.0
    %238 = vmatpush1.msra.mxu0 0.0
    %239 = vmatprep.subr.mxu0 0.0
    %240 = vmatpush1.msra.mxu0 0.0
    %241 = vmatprep.subr.mxu0 0.0
    %242 = vmatpush1.msra.mxu0 0.0
    %243 = vmatprep.subr.mxu0 0.0
    %244 = vmatpush1.msra.mxu0 0.0
    %245 = vmatprep.subr.mxu0 0.0
    %246 = vmatpush1.msra.mxu0 0.0
    %247 = vmatprep.subr.mxu0 0.0
    %248 = vmatpush1.msra.mxu0 0.0
    %249 = vmatprep.subr.mxu0 0.0
    %250 = vmatpush1.msra.mxu0 0.0
    %251 = vmatprep.subr.mxu0 0.0
    %252 = vmatpush1.msra.mxu0 0.0
    %253 = vmatprep.subr.mxu0 0.0
    %254 = vmatpush1.msra.mxu0 0.0
    %255 = vmatprep.subr.mxu0 0.0
    %256 = vmatpush1.msra.mxu0 0.0
    %257 = vmatprep.subr.mxu0 0.0
    %258 = vmatpush1.msra.mxu0 0.0
    %259 = vmatprep.subr.mxu0 0.0
    %260 = vmatpush1.msra.mxu0 0.0
    %261 = vmatprep.subr.mxu0 0.0
    %262 = vmatpush1.msra.mxu0 0.0
    %263 = vmatprep.subr.mxu0 %v229
    %264 = vmatpush1.msra.mxu0 %v226
    %265 = vmatprep.subr.mxu0 %v50
    %266 = vmatpush1.msra.mxu0 %v49
    %267 = vmatprep.subr.mxu0 %v46
    %268 = vmatpush1.msra.mxu0 %v45
    %269 = vmatprep.subr.mxu0 0.0
    %270 = vmatpush2.msra.mxu0 0.0
    %271 = vmatprep.subr.mxu0 0.0
    %272 = vmatpush2.msra.mxu0 0.0
    %273 = vmatprep.subr.mxu0 0.0
    %274 = vmatpush2.msra.mxu0 0.0
    %275 = vmatprep.subr.mxu0 0.0
    %276 = vmatpush2.msra.mxu0 0.0
    %277 = vmatprep.subr.mxu0 0.0
    %278 = vmatpush2.msra.mxu0 0.0
    %279 = vmatprep.subr.mxu0 0.0
    %280 = vmatpush2.msra.mxu0 0.0
    %281 = vmatprep.subr.mxu0 0.0
    %282 = vmatpush2.msra.mxu0 0.0
    %283 = vmatprep.subr.mxu0 0.0
    %284 = vmatpush2.msra.mxu0 0.0
    %285 = vmatprep.subr.mxu0 0.0
    %286 = vmatpush2.msra.mxu0 0.0
    %287 = vmatprep.subr.mxu0 0.0
    %288 = vmatpush2.msra.mxu0 0.0
    %289 = vmatprep.subr.mxu0 0.0
    %290 = vmatpush2.msra.mxu0 0.0
    %291 = vmatprep.subr.mxu0 0.0
    %292 = vmatpush2.msra.mxu0 0.0
    %293 = vmatprep.subr.mxu0 0.0
    %294 = vmatpush2.msra.mxu0 0.0
    %295 = vmatprep.subr.mxu0 0.0
    %296 = vmatpush2.msra.mxu0 0.0
    %297 = vmatprep.subr.mxu0 0.0
    %298 = vmatpush2.msra.mxu0 0.0
    %299 = vmatprep.subr.mxu0 0.0
    %300 = vmatpush2.msra.mxu0 0.0
    %301 = vmatprep.mubr.f32.mxu0 0.0
    %302 = vmatmul.mubr.f32.gmra.mxu0 %v222
    %v303 = vpop.f32.mrf.mxu0
    %v304 = vadd.f32 %v145, %v303
    %v305 = vpop.f32.mrf.mxu0
    %v306 = vadd.f32 %v147, %v305
    %307 = vdwg.mxu0
    %308 = vmatprep.subr.mxu0 0.0
    %309 = vmatpush1.msra.mxu0 0.0
    %310 = vmatprep.subr.mxu0 0.0
    %311 = vmatpush1.msra.mxu0 0.0
    %312 = vmatprep.subr.mxu0 0.0
    %313 = vmatpush1.msra.mxu0 0.0
    %314 = vmatprep.subr.mxu0 0.0
    %315 = vmatpush1.msra.mxu0 0.0
    %316 = vmatprep.subr.mxu0 0.0
    %317 = vmatpush1.msra.mxu0 0.0
    %318 = vmatprep.subr.mxu0 0.0
    %319 = vmatpush1.msra.mxu0 0.0
    %320 = vmatprep.subr.mxu0 0.0
    %321 = vmatpush1.msra.mxu0 0.0
    %322 = vmatprep.subr.mxu0 0.0
    %323 = vmatpush1.msra.mxu0 0.0
    %324 = vmatprep.subr.mxu0 0.0
    %325 = vmatpush1.msra.mxu0 0.0
    %326 = vmatprep.subr.mxu0 0.0
    %327 = vmatpush1.msra.mxu0 0.0
    %328 = vmatprep.subr.mxu0 0.0
    %329 = vmatpush1.msra.mxu0 0.0
    %330 = vmatprep.subr.mxu0 0.0
    %331 = vmatpush1.msra.mxu0 0.0
    %332 = vmatprep.subr.mxu0 0.0
    %333 = vmatpush1.msra.mxu0 0.0
    %334 = vmatprep.subr.mxu0 %v235
    %335 = vmatpush1.msra.mxu0 %v232
    %336 = vmatprep.subr.mxu0 %v52
    %337 = vmatpush1.msra.mxu0 %v51
    %338 = vmatprep.subr.mxu0 %v48
    %339 = vmatpush1.msra.mxu0 %v47
    %340 = vmatprep.subr.mxu0 0.0
    %341 = vmatpush2.msra.mxu0 0.0
    %342 = vmatprep.subr.mxu0 0.0
    %343 = vmatpush2.msra.mxu0 0.0
    %344 = vmatprep.subr.mxu0 0.0
    %345 = vmatpush2.msra.mxu0 0.0
    %346 = vmatprep.subr.mxu0 0.0
    %347 = vmatpush2.msra.mxu0 0.0
    %348 = vmatprep.subr.mxu0 0.0
    %349 = vmatpush2.msra.mxu0 0.0
    %350 = vmatprep.subr.mxu0 0.0
    %351 = vmatpush2.msra.mxu0 0.0
    %352 = vmatprep.subr.mxu0 0.0
    %353 = vmatpush2.msra.mxu0 0.0
    %354 = vmatprep.subr.mxu0 0.0
    %355 = vmatpush2.msra.mxu0 0.0
    %356 = vmatprep.subr.mxu0 0.0
    %357 = vmatpush2.msra.mxu0 0.0
    %358 = vmatprep.subr.mxu0 0.0
    %359 = vmatpush2.msra.mxu0 0.0
    %360 = vmatprep.subr.mxu0 0.0
    %361 = vmatpush2.msra.mxu0 0.0
    %362 = vmatprep.subr.mxu0 0.0
    %363 = vmatpush2.msra.mxu0 0.0
    %364 = vmatprep.subr.mxu0 0.0
    %365 = vmatpush2.msra.mxu0 0.0
    %366 = vmatprep.subr.mxu0 0.0
    %367 = vmatpush2.msra.mxu0 0.0
    %368 = vmatprep.subr.mxu0 0.0
    %369 = vmatpush2.msra.mxu0 0.0
    %370 = vmatprep.subr.mxu0 0.0
    %371 = vmatpush2.msra.mxu0 0.0
    %372 = vmatprep.mubr.f32.mxu0 0.0
    %373 = vmatmul.mubr.f32.gmra.mxu0 %v222
    %v374 = vpop.f32.mrf.mxu0
    %v375 = vadd.f32 %v216, %v374
    %v376 = vpop.f32.mrf.mxu0
    %v377 = vadd.f32 %v218, %v376
    %378 = vdwg.mxu0
    %v380 = vlaneseq
    %v381 = vshrl.u32 %v380, 7
    %v382 = vsub.s32 0, %v381
    %v383 = vrot.slane %v42, %v382
    %v384 = vlaneseq
    %v385 = vshrl.u32 %v384, 7
    %v386 = vsub.s32 1, %v385
    %v387 = vrot.slane %v42, %v386
    %v388 = vlaneseq
    %v389 = vshrl.u32 %v388, 7
    %v390 = vsub.s32 2, %v389
    %v391 = vrot.slane %v42, %v390
    %v392 = vlaneseq
    %v393 = vshrl.u32 %v392, 7
    %v394 = vsub.s32 3, %v393
    %v395 = vrot.slane %v42, %v394
    %v400 = vadd.f32 %v304, %v383
    %v401 = vadd.f32 %v306, %v387
    %v402 = vadd.f32 %v375, %v391
    %v403 = vadd.f32 %v377, %v395
    %v404 = vmax.f32 %v400, 0.0
    %v405 = vmax.f32 %v401, 0.0
    %v406 = vmax.f32 %v402, 0.0
    %v407 = vmax.f32 %v403, 0.0
    %v408 = vld [vmem:[#allocation2] sm:$0xff]
    %v409 = vld [vmem:[#allocation2 + $0x8] sm:$0xff]
    %v410 = vld [vmem:[#allocation2 + $0x10] sm:$0xff]
    %v411 = vld [vmem:[#allocation2 + $0x18] sm:$0xff]
    %v412 = vld [vmem:[#allocation2 + $0x20] sm:$0xff]
    %v413 = vld [vmem:[#allocation2 + $0x28] sm:$0xff]
    %v414 = vld [vmem:[#allocation2 + $0x30] sm:$0xff]
    %v415 = vld [vmem:[#allocation2 + $0x38] sm:$0xff]
    %v416 = vld [vmem:[#allocation2 + $0x40] sm:$0xff]
    %v417 = vld [vmem:[#allocation2 + $0x48] sm:$0xff]
    %v418 = vld [vmem:[#allocation2 + $0x50] sm:$0xff]
    %v419 = vld [vmem:[#allocation2 + $0x58] sm:$0xff]
    %v420 = vld [vmem:[#allocation2 + $0x60] sm:$0xff]
    %v421 = vld [vmem:[#allocation2 + $0x68] sm:$0xff]
    %v422 = vld [vmem:[#allocation2 + $0x70] sm:$0xff]
    %v423 = vld [vmem:[#allocation2 + $0x78] sm:$0xff]
    %v424 = vld [vmem:[#allocation2 + $0x80] sm:$0xff]
    %v425 = vld [vmem:[#allocation2 + $0x88] sm:$0xff]
    %v426 = vld [vmem:[#allocation2 + $0x90] sm:$0xff]
    %v427 = vld [vmem:[#allocation2 + $0x98] sm:$0xff]
    %v428 = vld [vmem:[#allocation2 + $0xa0] sm:$0xff]
    %v429 = vld [vmem:[#allocation2 + $0xa8] sm:$0xff]
    %v430 = vld [vmem:[#allocation2 + $0xb0] sm:$0xff]
    %v431 = vld [vmem:[#allocation2 + $0xb8] sm:$0xff]
    %v432 = vld [vmem:[#allocation2 + $0xc0] sm:$0xff]
    %v433 = vld [vmem:[#allocation2 + $0xc8] sm:$0xff]
    %v434 = vld [vmem:[#allocation2 + $0xd0] sm:$0xff]
    %v435 = vld [vmem:[#allocation2 + $0xd8] sm:$0xff]
    %v436 = vld [vmem:[#allocation2 + $0xe0] sm:$0xff]
    %v437 = vld [vmem:[#allocation2 + $0xe8] sm:$0xff]
    %v438 = vld [vmem:[#allocation2 + $0xf0] sm:$0xff]
    %v439 = vld [vmem:[#allocation2 + $0xf8] sm:$0xff]
    %v440 = vld [vmem:[#allocation2 + $0x100] sm:$0xff]
    %v441 = vld [vmem:[#allocation2 + $0x108] sm:$0xff]
    %v442 = vld [vmem:[#allocation2 + $0x110] sm:$0xff]
    %v443 = vld [vmem:[#allocation2 + $0x118] sm:$0xff]
    %v444 = vld [vmem:[#allocation2 + $0x120] sm:$0xff]
    %v445 = vld [vmem:[#allocation2 + $0x128] sm:$0xff]
    %v446 = vld [vmem:[#allocation2 + $0x130] sm:$0xff]
    %v447 = vld [vmem:[#allocation2 + $0x138] sm:$0xff]
    %v448 = vld [vmem:[#allocation2 + $0x140] sm:$0xff]
    %v449 = vld [vmem:[#allocation2 + $0x148] sm:$0xff]
    %v450 = vld [vmem:[#allocation2 + $0x150] sm:$0xff]
    %v451 = vld [vmem:[#allocation2 + $0x158] sm:$0xff]
    %v452 = vld [vmem:[#allocation2 + $0x160] sm:$0xff]
    %v453 = vld [vmem:[#allocation2 + $0x168] sm:$0xff]
    %v454 = vld [vmem:[#allocation2 + $0x170] sm:$0xff]
    %v455 = vld [vmem:[#allocation2 + $0x178] sm:$0xff]
    %v456 = vld [vmem:[#allocation2 + $0x180] sm:$0xff]
    %v457 = vld [vmem:[#allocation2 + $0x188] sm:$0xff]
    %v458 = vld [vmem:[#allocation2 + $0x190] sm:$0xff]
    %v459 = vld [vmem:[#allocation2 + $0x198] sm:$0xff]
    %v460 = vld [vmem:[#allocation2 + $0x1a0] sm:$0xff]
    %v461 = vld [vmem:[#allocation2 + $0x1a8] sm:$0xff]
    %v462 = vld [vmem:[#allocation2 + $0x1b0] sm:$0xff]
    %v463 = vld [vmem:[#allocation2 + $0x1b8] sm:$0xff]
    %v464 = vld [vmem:[#allocation2 + $0x1c0] sm:$0xff]
    %v465 = vld [vmem:[#allocation2 + $0x1c8] sm:$0xff]
    %v466 = vld [vmem:[#allocation2 + $0x1d0] sm:$0xff]
    %v467 = vld [vmem:[#allocation2 + $0x1d8] sm:$0xff]
    %v468 = vld [vmem:[#allocation2 + $0x1e0] sm:$0xff]
    %v469 = vld [vmem:[#allocation2 + $0x1e8] sm:$0xff]
    %v470 = vld [vmem:[#allocation2 + $0x1f0] sm:$0xff]
    %v471 = vld [vmem:[#allocation2 + $0x1f8] sm:$0xff]
    %v472 = vld [vmem:[#allocation2 + $0x200] sm:$0xff]
    %v473 = vld [vmem:[#allocation2 + $0x208] sm:$0xff]
    %v474 = vld [vmem:[#allocation2 + $0x210] sm:$0xff]
    %v475 = vld [vmem:[#allocation2 + $0x218] sm:$0xff]
    %v476 = vld [vmem:[#allocation2 + $0x220] sm:$0xff]
    %v477 = vld [vmem:[#allocation2 + $0x228] sm:$0xff]
    %v478 = vld [vmem:[#allocation2 + $0x230] sm:$0xff]
    %v479 = vld [vmem:[#allocation2 + $0x238] sm:$0xff]
    %v480 = vld [vmem:[#allocation2 + $0x240] sm:$0xff]
    %v481 = vld [vmem:[#allocation2 + $0x248] sm:$0xff]
    %v482 = vld [vmem:[#allocation2 + $0x250] sm:$0xff]
    %v483 = vld [vmem:[#allocation2 + $0x258] sm:$0xff]
    %v484 = vld [vmem:[#allocation2 + $0x260] sm:$0xff]
    %v485 = vld [vmem:[#allocation2 + $0x268] sm:$0xff]
    %v486 = vld [vmem:[#allocation2 + $0x270] sm:$0xff]
    %v487 = vld [vmem:[#allocation2 + $0x278] sm:$0xff]
    %v488 = vld [vmem:[#allocation2 + $0x280] sm:$0xff]
    %v489 = vld [vmem:[#allocation2 + $0x288] sm:$0xff]
    %v490 = vld [vmem:[#allocation2 + $0x290] sm:$0xff]
    %v491 = vld [vmem:[#allocation2 + $0x298] sm:$0xff]
    %v492 = vld [vmem:[#allocation2 + $0x2a0] sm:$0xff]
    %v493 = vld [vmem:[#allocation2 + $0x2a8] sm:$0xff]
    %v494 = vld [vmem:[#allocation2 + $0x2b0] sm:$0xff]
    %v495 = vld [vmem:[#allocation2 + $0x2b8] sm:$0xff]
    %v496 = vld [vmem:[#allocation2 + $0x2c0] sm:$0xff]
    %v497 = vld [vmem:[#allocation2 + $0x2c8] sm:$0xff]
    %v498 = vld [vmem:[#allocation2 + $0x2d0] sm:$0xff]
    %v499 = vld [vmem:[#allocation2 + $0x2d8] sm:$0xff]
    %v500 = vld [vmem:[#allocation2 + $0x2e0] sm:$0xff]
    %v501 = vld [vmem:[#allocation2 + $0x2e8] sm:$0xff]
    %v502 = vld [vmem:[#allocation2 + $0x2f0] sm:$0xff]
    %v503 = vld [vmem:[#allocation2 + $0x2f8] sm:$0xff]
    %v504 = vld [vmem:[#allocation2 + $0x300] sm:$0xff]
    %v505 = vld [vmem:[#allocation2 + $0x308] sm:$0xff]
    %v506 = vld [vmem:[#allocation2 + $0x310] sm:$0xff]
    %v507 = vld [vmem:[#allocation2 + $0x318] sm:$0xff]
    %v508 = vld [vmem:[#allocation2 + $0x320] sm:$0xff]
    %v509 = vld [vmem:[#allocation2 + $0x328] sm:$0xff]
    %v510 = vld [vmem:[#allocation2 + $0x330] sm:$0xff]
    %v511 = vld [vmem:[#allocation2 + $0x338] sm:$0xff]
    %v512 = vld [vmem:[#allocation2 + $0x340] sm:$0xff]
    %v513 = vld [vmem:[#allocation2 + $0x348] sm:$0xff]
    %v514 = vld [vmem:[#allocation2 + $0x350] sm:$0xff]
    %v515 = vld [vmem:[#allocation2 + $0x358] sm:$0xff]
    %v516 = vld [vmem:[#allocation2 + $0x360] sm:$0xff]
    %v517 = vld [vmem:[#allocation2 + $0x368] sm:$0xff]
    %v518 = vld [vmem:[#allocation2 + $0x370] sm:$0xff]
    %v519 = vld [vmem:[#allocation2 + $0x378] sm:$0xff]
    %v520 = vld [vmem:[#allocation2 + $0x380] sm:$0xff]
    %v521 = vld [vmem:[#allocation2 + $0x388] sm:$0xff]
    %v522 = vld [vmem:[#allocation2 + $0x390] sm:$0xff]
    %v523 = vld [vmem:[#allocation2 + $0x398] sm:$0xff]
    %v524 = vld [vmem:[#allocation2 + $0x3a0] sm:$0xff]
    %v525 = vld [vmem:[#allocation2 + $0x3a8] sm:$0xff]
    %v526 = vld [vmem:[#allocation2 + $0x3b0] sm:$0xff]
    %v527 = vld [vmem:[#allocation2 + $0x3b8] sm:$0xff]
    %v528 = vld [vmem:[#allocation2 + $0x3c0] sm:$0xff]
    %v529 = vld [vmem:[#allocation2 + $0x3c8] sm:$0xff]
    %v530 = vld [vmem:[#allocation2 + $0x3d0] sm:$0xff]
    %v531 = vld [vmem:[#allocation2 + $0x3d8] sm:$0xff]
    %v532 = vld [vmem:[#allocation2 + $0x3e0] sm:$0xff]
    %v533 = vld [vmem:[#allocation2 + $0x3e8] sm:$0xff]
    %v534 = vld [vmem:[#allocation2 + $0x3f0] sm:$0xff]
    %v535 = vld [vmem:[#allocation2 + $0x3f8] sm:$0xff]
    %v536 = vld [vmem:[#allocation2 + $0x400] sm:$0xff]
    %v537 = vld [vmem:[#allocation2 + $0x408] sm:$0xff]
    %v538 = vld [vmem:[#allocation2 + $0x410] sm:$0xff]
    %v539 = vld [vmem:[#allocation2 + $0x418] sm:$0xff]
    %v540 = vld [vmem:[#allocation2 + $0x420] sm:$0xff]
    %v541 = vld [vmem:[#allocation2 + $0x428] sm:$0xff]
    %v542 = vld [vmem:[#allocation2 + $0x430] sm:$0xff]
    %v543 = vld [vmem:[#allocation2 + $0x438] sm:$0xff]
    %v544 = vld [vmem:[#allocation2 + $0x440] sm:$0xff]
    %v545 = vld [vmem:[#allocation2 + $0x448] sm:$0xff]
    %v546 = vld [vmem:[#allocation2 + $0x450] sm:$0xff]
    %v547 = vld [vmem:[#allocation2 + $0x458] sm:$0xff]
    %v548 = vld [vmem:[#allocation2 + $0x460] sm:$0xff]
    %v549 = vld [vmem:[#allocation2 + $0x468] sm:$0xff]
    %v550 = vld [vmem:[#allocation2 + $0x470] sm:$0xff]
    %v551 = vld [vmem:[#allocation2 + $0x478] sm:$0xff]
    %v552 = vld [vmem:[#allocation2 + $0x480] sm:$0xff]
    %v553 = vld [vmem:[#allocation2 + $0x488] sm:$0xff]
    %v554 = vld [vmem:[#allocation2 + $0x490] sm:$0xff]
    %v555 = vld [vmem:[#allocation2 + $0x498] sm:$0xff]
    %v556 = vld [vmem:[#allocation2 + $0x4a0] sm:$0xff]
    %v557 = vld [vmem:[#allocation2 + $0x4a8] sm:$0xff]
    %v558 = vld [vmem:[#allocation2 + $0x4b0] sm:$0xff]
    %v559 = vld [vmem:[#allocation2 + $0x4b8] sm:$0xff]
    %v560 = vld [vmem:[#allocation2 + $0x4c0] sm:$0xff]
    %v561 = vld [vmem:[#allocation2 + $0x4c8] sm:$0xff]
    %v562 = vld [vmem:[#allocation2 + $0x4d0] sm:$0xff]
    %v563 = vld [vmem:[#allocation2 + $0x4d8] sm:$0xff]
    %v564 = vld [vmem:[#allocation2 + $0x4e0] sm:$0xff]
    %v565 = vld [vmem:[#allocation2 + $0x4e8] sm:$0xff]
    %v566 = vld [vmem:[#allocation2 + $0x4f0] sm:$0xff]
    %v567 = vld [vmem:[#allocation2 + $0x4f8] sm:$0xff]
    %v568 = vld [vmem:[#allocation2 + $0x500] sm:$0xff]
    %v569 = vld [vmem:[#allocation2 + $0x508] sm:$0xff]
    %v570 = vld [vmem:[#allocation2 + $0x510] sm:$0xff]
    %v571 = vld [vmem:[#allocation2 + $0x518] sm:$0xff]
    %v572 = vld [vmem:[#allocation2 + $0x520] sm:$0xff]
    %v573 = vld [vmem:[#allocation2 + $0x528] sm:$0xff]
    %v574 = vld [vmem:[#allocation2 + $0x530] sm:$0xff]
    %v575 = vld [vmem:[#allocation2 + $0x538] sm:$0xff]
    %v576 = vld [vmem:[#allocation2 + $0x540] sm:$0xff]
    %v577 = vld [vmem:[#allocation2 + $0x548] sm:$0xff]
    %v578 = vld [vmem:[#allocation2 + $0x550] sm:$0xff]
    %v579 = vld [vmem:[#allocation2 + $0x558] sm:$0xff]
    %v580 = vld [vmem:[#allocation2 + $0x560] sm:$0xff]
    %v581 = vld [vmem:[#allocation2 + $0x568] sm:$0xff]
    %v582 = vld [vmem:[#allocation2 + $0x570] sm:$0xff]
    %v583 = vld [vmem:[#allocation2 + $0x578] sm:$0xff]
    %v584 = vld [vmem:[#allocation2 + $0x580] sm:$0xff]
    %v585 = vld [vmem:[#allocation2 + $0x588] sm:$0xff]
    %v586 = vld [vmem:[#allocation2 + $0x590] sm:$0xff]
    %v587 = vld [vmem:[#allocation2 + $0x598] sm:$0xff]
    %v588 = vld [vmem:[#allocation2 + $0x5a0] sm:$0xff]
    %v589 = vld [vmem:[#allocation2 + $0x5a8] sm:$0xff]
    %v590 = vld [vmem:[#allocation2 + $0x5b0] sm:$0xff]
    %v591 = vld [vmem:[#allocation2 + $0x5b8] sm:$0xff]
    %v592 = vld [vmem:[#allocation2 + $0x5c0] sm:$0xff]
    %v593 = vld [vmem:[#allocation2 + $0x5c8] sm:$0xff]
    %v594 = vld [vmem:[#allocation2 + $0x5d0] sm:$0xff]
    %v595 = vld [vmem:[#allocation2 + $0x5d8] sm:$0xff]
    %v596 = vld [vmem:[#allocation2 + $0x5e0] sm:$0xff]
    %v597 = vld [vmem:[#allocation2 + $0x5e8] sm:$0xff]
    %v598 = vld [vmem:[#allocation2 + $0x5f0] sm:$0xff]
    %v599 = vld [vmem:[#allocation2 + $0x5f8] sm:$0xff]
    %v600 = vld [vmem:[#allocation2 + $0x600] sm:$0xff]
    %v601 = vld [vmem:[#allocation2 + $0x608] sm:$0xff]
    %v602 = vld [vmem:[#allocation2 + $0x610] sm:$0xff]
    %v603 = vld [vmem:[#allocation2 + $0x618] sm:$0xff]
    %v604 = vld [vmem:[#allocation2 + $0x620] sm:$0xff]
    %v605 = vld [vmem:[#allocation2 + $0x628] sm:$0xff]
    %v606 = vld [vmem:[#allocation2 + $0x630] sm:$0xff]
    %v607 = vld [vmem:[#allocation2 + $0x638] sm:$0xff]
    %v608 = vld [vmem:[#allocation2 + $0x640] sm:$0xff]
    %v609 = vld [vmem:[#allocation2 + $0x648] sm:$0xff]
    %v610 = vld [vmem:[#allocation2 + $0x650] sm:$0xff]
    %v611 = vld [vmem:[#allocation2 + $0x658] sm:$0xff]
    %v612 = vld [vmem:[#allocation2 + $0x660] sm:$0xff]
    %v613 = vld [vmem:[#allocation2 + $0x668] sm:$0xff]
    %v614 = vld [vmem:[#allocation2 + $0x670] sm:$0xff]
    %v615 = vld [vmem:[#allocation2 + $0x678] sm:$0xff]
    %v616 = vld [vmem:[#allocation2 + $0x680] sm:$0xff]
    %v617 = vld [vmem:[#allocation2 + $0x688] sm:$0xff]
    %v618 = vld [vmem:[#allocation2 + $0x690] sm:$0xff]
    %v619 = vld [vmem:[#allocation2 + $0x698] sm:$0xff]
    %v620 = vld [vmem:[#allocation2 + $0x6a0] sm:$0xff]
    %v621 = vld [vmem:[#allocation2 + $0x6a8] sm:$0xff]
    %v622 = vld [vmem:[#allocation2 + $0x6b0] sm:$0xff]
    %v623 = vld [vmem:[#allocation2 + $0x6b8] sm:$0xff]
    %v624 = vld [vmem:[#allocation2 + $0x6c0] sm:$0xff]
    %v625 = vld [vmem:[#allocation2 + $0x6c8] sm:$0xff]
    %v626 = vld [vmem:[#allocation2 + $0x6d0] sm:$0xff]
    %v627 = vld [vmem:[#allocation2 + $0x6d8] sm:$0xff]
    %v628 = vld [vmem:[#allocation2 + $0x6e0] sm:$0xff]
    %v629 = vld [vmem:[#allocation2 + $0x6e8] sm:$0xff]
    %v630 = vld [vmem:[#allocation2 + $0x6f0] sm:$0xff]
    %v631 = vld [vmem:[#allocation2 + $0x6f8] sm:$0xff]
    %v632 = vld [vmem:[#allocation2 + $0x700] sm:$0xff]
    %v633 = vld [vmem:[#allocation2 + $0x708] sm:$0xff]
    %v634 = vld [vmem:[#allocation2 + $0x710] sm:$0xff]
    %v635 = vld [vmem:[#allocation2 + $0x718] sm:$0xff]
    %v636 = vld [vmem:[#allocation2 + $0x720] sm:$0xff]
    %v637 = vld [vmem:[#allocation2 + $0x728] sm:$0xff]
    %v638 = vld [vmem:[#allocation2 + $0x730] sm:$0xff]
    %v639 = vld [vmem:[#allocation2 + $0x738] sm:$0xff]
    %v640 = vld [vmem:[#allocation2 + $0x740] sm:$0xff]
    %v641 = vld [vmem:[#allocation2 + $0x748] sm:$0xff]
    %v642 = vld [vmem:[#allocation2 + $0x750] sm:$0xff]
    %v643 = vld [vmem:[#allocation2 + $0x758] sm:$0xff]
    %v644 = vld [vmem:[#allocation2 + $0x760] sm:$0xff]
    %v645 = vld [vmem:[#allocation2 + $0x768] sm:$0xff]
    %v646 = vld [vmem:[#allocation2 + $0x770] sm:$0xff]
    %v647 = vld [vmem:[#allocation2 + $0x778] sm:$0xff]
    %v648 = vld [vmem:[#allocation2 + $0x780] sm:$0xff]
    %v649 = vld [vmem:[#allocation2 + $0x788] sm:$0xff]
    %v650 = vld [vmem:[#allocation2 + $0x790] sm:$0xff]
    %v651 = vld [vmem:[#allocation2 + $0x798] sm:$0xff]
    %v652 = vld [vmem:[#allocation2 + $0x7a0] sm:$0xff]
    %v653 = vld [vmem:[#allocation2 + $0x7a8] sm:$0xff]
    %v654 = vld [vmem:[#allocation2 + $0x7b0] sm:$0xff]
    %v655 = vld [vmem:[#allocation2 + $0x7b8] sm:$0xff]
    %v656 = vld [vmem:[#allocation2 + $0x7c0] sm:$0xff]
    %v657 = vld [vmem:[#allocation2 + $0x7c8] sm:$0xff]
    %v658 = vld [vmem:[#allocation2 + $0x7d0] sm:$0xff]
    %v659 = vld [vmem:[#allocation2 + $0x7d8] sm:$0xff]
    %v660 = vld [vmem:[#allocation2 + $0x7e0] sm:$0xff]
    %v661 = vld [vmem:[#allocation2 + $0x7e8] sm:$0xff]
    %v662 = vld [vmem:[#allocation2 + $0x7f0] sm:$0xff]
    %v663 = vld [vmem:[#allocation2 + $0x7f8] sm:$0xff]
    %v665 = vlaneseq
    %v666 = vshrl.u32 %v665, 7
    %v667 = vsub.s32 0, %v666
    %v668 = vrot.slane %v43, %v667
    %v669 = vlaneseq
    %v670 = vshrl.u32 %v669, 7
    %v671 = vsub.s32 1, %v670
    %v672 = vrot.slane %v43, %v671
    %v673 = vlaneseq
    %v674 = vshrl.u32 %v673, 7
    %v675 = vsub.s32 2, %v674
    %v676 = vrot.slane %v43, %v675
    %v677 = vlaneseq
    %v678 = vshrl.u32 %v677, 7
    %v679 = vsub.s32 3, %v678
    %v680 = vrot.slane %v43, %v679
    %685 = vmatprep.subr.mxu0 %v469
    %686 = vmatpush1.msra.mxu0 %v468
    %687 = vmatprep.subr.mxu0 %v465
    %688 = vmatpush1.msra.mxu0 %v464
    %689 = vmatprep.subr.mxu0 %v461
    %690 = vmatpush1.msra.mxu0 %v460
    %691 = vmatprep.subr.mxu0 %v457
    %692 = vmatpush1.msra.mxu0 %v456
    %693 = vmatprep.subr.mxu0 %v453
    %694 = vmatpush1.msra.mxu0 %v452
    %695 = vmatprep.subr.mxu0 %v449
    %696 = vmatpush1.msra.mxu0 %v448
    %697 = vmatprep.subr.mxu0 %v445
    %698 = vmatpush1.msra.mxu0 %v444
    %699 = vmatprep.subr.mxu0 %v441
    %700 = vmatpush1.msra.mxu0 %v440
    %701 = vmatprep.subr.mxu0 %v437
    %702 = vmatpush1.msra.mxu0 %v436
    %703 = vmatprep.subr.mxu0 %v433
    %704 = vmatpush1.msra.mxu0 %v432
    %705 = vmatprep.subr.mxu0 %v429
    %706 = vmatpush1.msra.mxu0 %v428
    %707 = vmatprep.subr.mxu0 %v425
    %708 = vmatpush1.msra.mxu0 %v424
    %709 = vmatprep.subr.mxu0 %v421
    %710 = vmatpush1.msra.mxu0 %v420
    %711 = vmatprep.subr.mxu0 %v417
    %712 = vmatpush1.msra.mxu0 %v416
    %713 = vmatprep.subr.mxu0 %v413
    %714 = vmatpush1.msra.mxu0 %v412
    %715 = vmatprep.subr.mxu0 %v409
    %716 = vmatpush1.msra.mxu0 %v408
    %717 = vmatprep.subr.mxu0 %v533
    %718 = vmatpush2.msra.mxu0 %v532
    %719 = vmatprep.subr.mxu0 %v529
    %720 = vmatpush2.msra.mxu0 %v528
    %721 = vmatprep.subr.mxu0 %v525
    %722 = vmatpush2.msra.mxu0 %v524
    %723 = vmatprep.subr.mxu0 %v521
    %724 = vmatpush2.msra.mxu0 %v520
    %725 = vmatprep.subr.mxu0 %v517
    %726 = vmatpush2.msra.mxu0 %v516
    %727 = vmatprep.subr.mxu0 %v513
    %728 = vmatpush2.msra.mxu0 %v512
    %729 = vmatprep.subr.mxu0 %v509
    %730 = vmatpush2.msra.mxu0 %v508
    %731 = vmatprep.subr.mxu0 %v505
    %732 = vmatpush2.msra.mxu0 %v504
    %733 = vmatprep.subr.mxu0 %v501
    %734 = vmatpush2.msra.mxu0 %v500
    %735 = vmatprep.subr.mxu0 %v497
    %736 = vmatpush2.msra.mxu0 %v496
    %737 = vmatprep.subr.mxu0 %v493
    %738 = vmatpush2.msra.mxu0 %v492
    %739 = vmatprep.subr.mxu0 %v489
    %740 = vmatpush2.msra.mxu0 %v488
    %741 = vmatprep.subr.mxu0 %v485
    %742 = vmatpush2.msra.mxu0 %v484
    %743 = vmatprep.subr.mxu0 %v481
    %744 = vmatpush2.msra.mxu0 %v480
    %745 = vmatprep.subr.mxu0 %v477
    %746 = vmatpush2.msra.mxu0 %v476
    %747 = vmatprep.subr.mxu0 %v473
    %748 = vmatpush2.msra.mxu0 %v472
    %749 = vmatprep.mubr.f32.mxu0 %v405
    %750 = vmatmul.mubr.f32.gmra.mxu0 %v404
    %v751 = vpop.f32.mrf.mxu0
    %v752 = vadd.f32 %v668, %v751
    %v753 = vpop.f32.mrf.mxu0
    %v754 = vadd.f32 %v672, %v753
    %755 = vdwg.mxu0
    %756 = vmatprep.subr.mxu0 %v597
    %757 = vmatpush1.msra.mxu0 %v596
    %758 = vmatprep.subr.mxu0 %v593
    %759 = vmatpush1.msra.mxu0 %v592
    %760 = vmatprep.subr.mxu0 %v589
    %761 = vmatpush1.msra.mxu0 %v588
    %762 = vmatprep.subr.mxu0 %v585
    %763 = vmatpush1.msra.mxu0 %v584
    %764 = vmatprep.subr.mxu0 %v581
    %765 = vmatpush1.msra.mxu0 %v580
    %766 = vmatprep.subr.mxu0 %v577
    %767 = vmatpush1.msra.mxu0 %v576
    %768 = vmatprep.subr.mxu0 %v573
    %769 = vmatpush1.msra.mxu0 %v572
    %770 = vmatprep.subr.mxu0 %v569
    %771 = vmatpush1.msra.mxu0 %v568
    %772 = vmatprep.subr.mxu0 %v565
    %773 = vmatpush1.msra.mxu0 %v564
    %774 = vmatprep.subr.mxu0 %v561
    %775 = vmatpush1.msra.mxu0 %v560
    %776 = vmatprep.subr.mxu0 %v557
    %777 = vmatpush1.msra.mxu0 %v556
    %778 = vmatprep.subr.mxu0 %v553
    %779 = vmatpush1.msra.mxu0 %v552
    %780 = vmatprep.subr.mxu0 %v549
    %781 = vmatpush1.msra.mxu0 %v548
    %782 = vmatprep.subr.mxu0 %v545
    %783 = vmatpush1.msra.mxu0 %v544
    %784 = vmatprep.subr.mxu0 %v541
    %785 = vmatpush1.msra.mxu0 %v540
    %786 = vmatprep.subr.mxu0 %v537
    %787 = vmatpush1.msra.mxu0 %v536
    %788 = vmatprep.subr.mxu0 %v661
    %789 = vmatpush2.msra.mxu0 %v660
    %790 = vmatprep.subr.mxu0 %v657
    %791 = vmatpush2.msra.mxu0 %v656
    %792 = vmatprep.subr.mxu0 %v653
    %793 = vmatpush2.msra.mxu0 %v652
    %794 = vmatprep.subr.mxu0 %v649
    %795 = vmatpush2.msra.mxu0 %v648
    %796 = vmatprep.subr.mxu0 %v645
    %797 = vmatpush2.msra.mxu0 %v644
    %798 = vmatprep.subr.mxu0 %v641
    %799 = vmatpush2.msra.mxu0 %v640
    %800 = vmatprep.subr.mxu0 %v637
    %801 = vmatpush2.msra.mxu0 %v636
    %802 = vmatprep.subr.mxu0 %v633
    %803 = vmatpush2.msra.mxu0 %v632
    %804 = vmatprep.subr.mxu0 %v629
    %805 = vmatpush2.msra.mxu0 %v628
    %806 = vmatprep.subr.mxu0 %v625
    %807 = vmatpush2.msra.mxu0 %v624
    %808 = vmatprep.subr.mxu0 %v621
    %809 = vmatpush2.msra.mxu0 %v620
    %810 = vmatprep.subr.mxu0 %v617
    %811 = vmatpush2.msra.mxu0 %v616
    %812 = vmatprep.subr.mxu0 %v613
    %813 = vmatpush2.msra.mxu0 %v612
    %814 = vmatprep.subr.mxu0 %v609
    %815 = vmatpush2.msra.mxu0 %v608
    %816 = vmatprep.subr.mxu0 %v605
    %817 = vmatpush2.msra.mxu0 %v604
    %818 = vmatprep.subr.mxu0 %v601
    %819 = vmatpush2.msra.mxu0 %v600
    %820 = vmatprep.mubr.f32.mxu0 %v407
    %821 = vmatmul.mubr.f32.gmra.mxu0 %v406
    %v822 = vpop.f32.mrf.mxu0
    %v823 = vadd.f32 %v752, %v822
    %v824 = vpop.f32.mrf.mxu0
    %v825 = vadd.f32 %v754, %v824
    %826 = vdwg.mxu0
    %827 = vmatprep.subr.mxu0 %v471
    %828 = vmatpush1.msra.mxu0 %v470
    %829 = vmatprep.subr.mxu0 %v467
    %830 = vmatpush1.msra.mxu0 %v466
    %831 = vmatprep.subr.mxu0 %v463
    %832 = vmatpush1.msra.mxu0 %v462
    %833 = vmatprep.subr.mxu0 %v459
    %834 = vmatpush1.msra.mxu0 %v458
    %835 = vmatprep.subr.mxu0 %v455
    %836 = vmatpush1.msra.mxu0 %v454
    %837 = vmatprep.subr.mxu0 %v451
    %838 = vmatpush1.msra.mxu0 %v450
    %839 = vmatprep.subr.mxu0 %v447
    %840 = vmatpush1.msra.mxu0 %v446
    %841 = vmatprep.subr.mxu0 %v443
    %842 = vmatpush1.msra.mxu0 %v442
    %843 = vmatprep.subr.mxu0 %v439
    %844 = vmatpush1.msra.mxu0 %v438
    %845 = vmatprep.subr.mxu0 %v435
    %846 = vmatpush1.msra.mxu0 %v434
    %847 = vmatprep.subr.mxu0 %v431
    %848 = vmatpush1.msra.mxu0 %v430
    %849 = vmatprep.subr.mxu0 %v427
    %850 = vmatpush1.msra.mxu0 %v426
    %851 = vmatprep.subr.mxu0 %v423
    %852 = vmatpush1.msra.mxu0 %v422
    %853 = vmatprep.subr.mxu0 %v419
    %854 = vmatpush1.msra.mxu0 %v418
    %855 = vmatprep.subr.mxu0 %v415
    %856 = vmatpush1.msra.mxu0 %v414
    %857 = vmatprep.subr.mxu0 %v411
    %858 = vmatpush1.msra.mxu0 %v410
    %859 = vmatprep.subr.mxu0 %v535
    %860 = vmatpush2.msra.mxu0 %v534
    %861 = vmatprep.subr.mxu0 %v531
    %862 = vmatpush2.msra.mxu0 %v530
    %863 = vmatprep.subr.mxu0 %v527
    %864 = vmatpush2.msra.mxu0 %v526
    %865 = vmatprep.subr.mxu0 %v523
    %866 = vmatpush2.msra.mxu0 %v522
    %867 = vmatprep.subr.mxu0 %v519
    %868 = vmatpush2.msra.mxu0 %v518
    %869 = vmatprep.subr.mxu0 %v515
    %870 = vmatpush2.msra.mxu0 %v514
    %871 = vmatprep.subr.mxu0 %v511
    %872 = vmatpush2.msra.mxu0 %v510
    %873 = vmatprep.subr.mxu0 %v507
    %874 = vmatpush2.msra.mxu0 %v506
    %875 = vmatprep.subr.mxu0 %v503
    %876 = vmatpush2.msra.mxu0 %v502
    %877 = vmatprep.subr.mxu0 %v499
    %878 = vmatpush2.msra.mxu0 %v498
    %879 = vmatprep.subr.mxu0 %v495
    %880 = vmatpush2.msra.mxu0 %v494
    %881 = vmatprep.subr.mxu0 %v491
    %882 = vmatpush2.msra.mxu0 %v490
    %883 = vmatprep.subr.mxu0 %v487
    %884 = vmatpush2.msra.mxu0 %v486
    %885 = vmatprep.subr.mxu0 %v483
    %886 = vmatpush2.msra.mxu0 %v482
    %887 = vmatprep.subr.mxu0 %v479
    %888 = vmatpush2.msra.mxu0 %v478
    %889 = vmatprep.subr.mxu0 %v475
    %890 = vmatpush2.msra.mxu0 %v474
    %891 = vmatprep.mubr.f32.mxu0 %v405
    %892 = vmatmul.mubr.f32.gmra.mxu0 %v404
    %v893 = vpop.f32.mrf.mxu0
    %v894 = vadd.f32 %v676, %v893
    %v895 = vpop.f32.mrf.mxu0
    %v896 = vadd.f32 %v680, %v895
    %897 = vdwg.mxu0
    %898 = vmatprep.subr.mxu0 %v599
    %899 = vmatpush1.msra.mxu0 %v598
    %900 = vmatprep.subr.mxu0 %v595
    %901 = vmatpush1.msra.mxu0 %v594
    %902 = vmatprep.subr.mxu0 %v591
    %903 = vmatpush1.msra.mxu0 %v590
    %904 = vmatprep.subr.mxu0 %v587
    %905 = vmatpush1.msra.mxu0 %v586
    %906 = vmatprep.subr.mxu0 %v583
    %907 = vmatpush1.msra.mxu0 %v582
    %908 = vmatprep.subr.mxu0 %v579
    %909 = vmatpush1.msra.mxu0 %v578
    %910 = vmatprep.subr.mxu0 %v575
    %911 = vmatpush1.msra.mxu0 %v574
    %912 = vmatprep.subr.mxu0 %v571
    %913 = vmatpush1.msra.mxu0 %v570
    %914 = vmatprep.subr.mxu0 %v567
    %915 = vmatpush1.msra.mxu0 %v566
    %916 = vmatprep.subr.mxu0 %v563
    %917 = vmatpush1.msra.mxu0 %v562
    %918 = vmatprep.subr.mxu0 %v559
    %919 = vmatpush1.msra.mxu0 %v558
    %920 = vmatprep.subr.mxu0 %v555
    %921 = vmatpush1.msra.mxu0 %v554
    %922 = vmatprep.subr.mxu0 %v551
    %923 = vmatpush1.msra.mxu0 %v550
    %924 = vmatprep.subr.mxu0 %v547
    %925 = vmatpush1.msra.mxu0 %v546
    %926 = vmatprep.subr.mxu0 %v543
    %927 = vmatpush1.msra.mxu0 %v542
    %928 = vmatprep.subr.mxu0 %v539
    %929 = vmatpush1.msra.mxu0 %v538
    %930 = vmatprep.subr.mxu0 %v663
    %931 = vmatpush2.msra.mxu0 %v662
    %932 = vmatprep.subr.mxu0 %v659
    %933 = vmatpush2.msra.mxu0 %v658
    %934 = vmatprep.subr.mxu0 %v655
    %935 = vmatpush2.msra.mxu0 %v654
    %936 = vmatprep.subr.mxu0 %v651
    %937 = vmatpush2.msra.mxu0 %v650
    %938 = vmatprep.subr.mxu0 %v647
    %939 = vmatpush2.msra.mxu0 %v646
    %940 = vmatprep.subr.mxu0 %v643
    %941 = vmatpush2.msra.mxu0 %v642
    %942 = vmatprep.subr.mxu0 %v639
    %943 = vmatpush2.msra.mxu0 %v638
    %944 = vmatprep.subr.mxu0 %v635
    %945 = vmatpush2.msra.mxu0 %v634
    %946 = vmatprep.subr.mxu0 %v631
    %947 = vmatpush2.msra.mxu0 %v630
    %948 = vmatprep.subr.mxu0 %v627
    %949 = vmatpush2.msra.mxu0 %v626
    %950 = vmatprep.subr.mxu0 %v623
    %951 = vmatpush2.msra.mxu0 %v622
    %952 = vmatprep.subr.mxu0 %v619
    %953 = vmatpush2.msra.mxu0 %v618
    %954 = vmatprep.subr.mxu0 %v615
    %955 = vmatpush2.msra.mxu0 %v614
    %956 = vmatprep.subr.mxu0 %v611
    %957 = vmatpush2.msra.mxu0 %v610
    %958 = vmatprep.subr.mxu0 %v607
    %959 = vmatpush2.msra.mxu0 %v606
    %960 = vmatprep.subr.mxu0 %v603
    %961 = vmatpush2.msra.mxu0 %v602
    %962 = vmatprep.mubr.f32.mxu0 %v407
    %963 = vmatmul.mubr.f32.gmra.mxu0 %v406
    %v964 = vpop.f32.mrf.mxu0
    %v965 = vadd.f32 %v894, %v964
    %v966 = vpop.f32.mrf.mxu0
    %v967 = vadd.f32 %v896, %v966
    %968 = vdwg.mxu0
    %v969 = vmax.f32 %v823, 0.0
    %v970 = vmax.f32 %v825, 0.0
    %v971 = vmax.f32 %v965, 0.0
    %v972 = vmax.f32 %v967, 0.0
    %v973 = vld [vmem:[%s5] sm:$0xff]
    %v974 = vld [vmem:[%s5 + $0x8] sm:$0xff]
    %v975 = vld [vmem:[%s5 + $0x10] sm:$0xff]
    %v976 = vld [vmem:[%s5 + $0x18] sm:$0xff]
    %v977 = vld [vmem:[%s5 + $0x20] sm:$0xff]
    %v978 = vld [vmem:[%s5 + $0x28] sm:$0xff]
    %v979 = vld [vmem:[%s5 + $0x30] sm:$0xff]
    %v980 = vld [vmem:[%s5 + $0x38] sm:$0xff]
    %v981 = vld [vmem:[%s5 + $0x40] sm:$0xff]
    %v982 = vld [vmem:[%s5 + $0x48] sm:$0xff]
    %v983 = vld [vmem:[%s5 + $0x50] sm:$0xff]
    %v984 = vld [vmem:[%s5 + $0x58] sm:$0xff]
    %v985 = vld [vmem:[%s5 + $0x60] sm:$0xff]
    %v986 = vld [vmem:[%s5 + $0x68] sm:$0xff]
    %v987 = vld [vmem:[%s5 + $0x70] sm:$0xff]
    %v988 = vld [vmem:[%s5 + $0x78] sm:$0xff]
    %v989 = vld [vmem:[%s5 + $0x80] sm:$0xff]
    %v990 = vld [vmem:[%s5 + $0x88] sm:$0xff]
    %v991 = vld [vmem:[%s5 + $0x90] sm:$0xff]
    %v992 = vld [vmem:[%s5 + $0x98] sm:$0xff]
    %v993 = vld [vmem:[%s5 + $0xa0] sm:$0xff]
    %v994 = vld [vmem:[%s5 + $0xa8] sm:$0xff]
    %v995 = vld [vmem:[%s5 + $0xb0] sm:$0xff]
    %v996 = vld [vmem:[%s5 + $0xb8] sm:$0xff]
    %v997 = vld [vmem:[%s5 + $0xc0] sm:$0xff]
    %v998 = vld [vmem:[%s5 + $0xc8] sm:$0xff]
    %v999 = vld [vmem:[%s5 + $0xd0] sm:$0xff]
    %v1000 = vld [vmem:[%s5 + $0xd8] sm:$0xff]
    %v1001 = vld [vmem:[%s5 + $0xe0] sm:$0xff]
    %v1002 = vld [vmem:[%s5 + $0xe8] sm:$0xff]
    %v1003 = vld [vmem:[%s5 + $0xf0] sm:$0xff]
    %v1004 = vld [vmem:[%s5 + $0xf8] sm:$0xff]
    %v1005 = vld [vmem:[%s5 + $0x100] sm:$0xff]
    %v1006 = vld [vmem:[%s5 + $0x108] sm:$0xff]
    %v1007 = vld [vmem:[%s5 + $0x110] sm:$0xff]
    %v1008 = vld [vmem:[%s5 + $0x118] sm:$0xff]
    %v1009 = vld [vmem:[%s5 + $0x120] sm:$0xff]
    %v1010 = vld [vmem:[%s5 + $0x128] sm:$0xff]
    %v1011 = vld [vmem:[%s5 + $0x130] sm:$0xff]
    %v1012 = vld [vmem:[%s5 + $0x138] sm:$0xff]
    %v1013 = vld [vmem:[%s5 + $0x140] sm:$0xff]
    %v1014 = vld [vmem:[%s5 + $0x148] sm:$0xff]
    %v1015 = vld [vmem:[%s5 + $0x150] sm:$0xff]
    %v1016 = vld [vmem:[%s5 + $0x158] sm:$0xff]
    %v1017 = vld [vmem:[%s5 + $0x160] sm:$0xff]
    %v1018 = vld [vmem:[%s5 + $0x168] sm:$0xff]
    %v1019 = vld [vmem:[%s5 + $0x170] sm:$0xff]
    %v1020 = vld [vmem:[%s5 + $0x178] sm:$0xff]
    %v1021 = vld [vmem:[%s5 + $0x180] sm:$0xff]
    %v1022 = vld [vmem:[%s5 + $0x188] sm:$0xff]
    %v1023 = vld [vmem:[%s5 + $0x190] sm:$0xff]
    %v1024 = vld [vmem:[%s5 + $0x198] sm:$0xff]
    %v1025 = vld [vmem:[%s5 + $0x1a0] sm:$0xff]
    %v1026 = vld [vmem:[%s5 + $0x1a8] sm:$0xff]
    %v1027 = vld [vmem:[%s5 + $0x1b0] sm:$0xff]
    %v1028 = vld [vmem:[%s5 + $0x1b8] sm:$0xff]
    %v1029 = vld [vmem:[%s5 + $0x1c0] sm:$0xff]
    %v1030 = vld [vmem:[%s5 + $0x1c8] sm:$0xff]
    %v1031 = vld [vmem:[%s5 + $0x1d0] sm:$0xff]
    %v1032 = vld [vmem:[%s5 + $0x1d8] sm:$0xff]
    %v1033 = vld [vmem:[%s5 + $0x1e0] sm:$0xff]
    %v1034 = vld [vmem:[%s5 + $0x1e8] sm:$0xff]
    %v1035 = vld [vmem:[%s5 + $0x1f0] sm:$0xff]
    %v1036 = vld [vmem:[%s5 + $0x1f8] sm:$0xff]
    %v1038 = vlaneseq
    %v1039 = vshrl.u32 %v1038, 7
    %v1040 = vsub.s32 0, %v1039
    %v1041 = vrot.slane %v44, %v1040
    %1043 = vmatprep.subr.mxu0 0.0
    %1044 = vmatpush1.msra.mxu0 %v988
    %1045 = vmatprep.subr.mxu0 0.0
    %1046 = vmatpush1.msra.mxu0 %v987
    %1047 = vmatprep.subr.mxu0 0.0
    %1048 = vmatpush1.msra.mxu0 %v986
    %1049 = vmatprep.subr.mxu0 0.0
    %1050 = vmatpush1.msra.mxu0 %v985
    %1051 = vmatprep.subr.mxu0 0.0
    %1052 = vmatpush1.msra.mxu0 %v984
    %1053 = vmatprep.subr.mxu0 0.0
    %1054 = vmatpush1.msra.mxu0 %v983
    %1055 = vmatprep.subr.mxu0 0.0
    %1056 = vmatpush1.msra.mxu0 %v982
    %1057 = vmatprep.subr.mxu0 0.0
    %1058 = vmatpush1.msra.mxu0 %v981
    %1059 = vmatprep.subr.mxu0 0.0
    %1060 = vmatpush1.msra.mxu0 %v980
    %1061 = vmatprep.subr.mxu0 0.0
    %1062 = vmatpush1.msra.mxu0 %v979
    %1063 = vmatprep.subr.mxu0 0.0
    %1064 = vmatpush1.msra.mxu0 %v978
    %1065 = vmatprep.subr.mxu0 0.0
    %1066 = vmatpush1.msra.mxu0 %v977
    %1067 = vmatprep.subr.mxu0 0.0
    %1068 = vmatpush1.msra.mxu0 %v976
    %1069 = vmatprep.subr.mxu0 0.0
    %1070 = vmatpush1.msra.mxu0 %v975
    %1071 = vmatprep.subr.mxu0 0.0
    %1072 = vmatpush1.msra.mxu0 %v974
    %1073 = vmatprep.subr.mxu0 0.0
    %1074 = vmatpush1.msra.mxu0 %v973
    %1075 = vmatprep.subr.mxu0 0.0
    %1076 = vmatpush2.msra.mxu0 %v1004
    %1077 = vmatprep.subr.mxu0 0.0
    %1078 = vmatpush2.msra.mxu0 %v1003
    %1079 = vmatprep.subr.mxu0 0.0
    %1080 = vmatpush2.msra.mxu0 %v1002
    %1081 = vmatprep.subr.mxu0 0.0
    %1082 = vmatpush2.msra.mxu0 %v1001
    %1083 = vmatprep.subr.mxu0 0.0
    %1084 = vmatpush2.msra.mxu0 %v1000
    %1085 = vmatprep.subr.mxu0 0.0
    %1086 = vmatpush2.msra.mxu0 %v999
    %1087 = vmatprep.subr.mxu0 0.0
    %1088 = vmatpush2.msra.mxu0 %v998
    %1089 = vmatprep.subr.mxu0 0.0
    %1090 = vmatpush2.msra.mxu0 %v997
    %1091 = vmatprep.subr.mxu0 0.0
    %1092 = vmatpush2.msra.mxu0 %v996
    %1093 = vmatprep.subr.mxu0 0.0
    %1094 = vmatpush2.msra.mxu0 %v995
    %1095 = vmatprep.subr.mxu0 0.0
    %1096 = vmatpush2.msra.mxu0 %v994
    %1097 = vmatprep.subr.mxu0 0.0
    %1098 = vmatpush2.msra.mxu0 %v993
    %1099 = vmatprep.subr.mxu0 0.0
    %1100 = vmatpush2.msra.mxu0 %v992
    %1101 = vmatprep.subr.mxu0 0.0
    %1102 = vmatpush2.msra.mxu0 %v991
    %1103 = vmatprep.subr.mxu0 0.0
    %1104 = vmatpush2.msra.mxu0 %v990
    %1105 = vmatprep.subr.mxu0 0.0
    %1106 = vmatpush2.msra.mxu0 %v989
    %1107 = vmatprep.mubr.f32.mxu0 %v970
    %1108 = vmatmul.mubr.f32.gmra.mxu0 %v969
    %v1109 = vpop.f32.mrf.mxu0
    %v1110 = vadd.f32 %v1041, %v1109
    %v1111 = vpop.f32.mrf.mxu0
    %1112 = vdwg.mxu0
    %1113 = vmatprep.subr.mxu0 0.0
    %1114 = vmatpush1.msra.mxu0 %v1020
    %1115 = vmatprep.subr.mxu0 0.0
    %1116 = vmatpush1.msra.mxu0 %v1019
    %1117 = vmatprep.subr.mxu0 0.0
    %1118 = vmatpush1.msra.mxu0 %v1018
    %1119 = vmatprep.subr.mxu0 0.0
    %1120 = vmatpush1.msra.mxu0 %v1017
    %1121 = vmatprep.subr.mxu0 0.0
    %1122 = vmatpush1.msra.mxu0 %v1016
    %1123 = vmatprep.subr.mxu0 0.0
    %1124 = vmatpush1.msra.mxu0 %v1015
    %1125 = vmatprep.subr.mxu0 0.0
    %1126 = vmatpush1.msra.mxu0 %v1014
    %1127 = vmatprep.subr.mxu0 0.0
    %1128 = vmatpush1.msra.mxu0 %v1013
    %1129 = vmatprep.subr.mxu0 0.0
    %1130 = vmatpush1.msra.mxu0 %v1012
    %1131 = vmatprep.subr.mxu0 0.0
    %1132 = vmatpush1.msra.mxu0 %v1011
    %1133 = vmatprep.subr.mxu0 0.0
    %1134 = vmatpush1.msra.mxu0 %v1010
    %1135 = vmatprep.subr.mxu0 0.0
    %1136 = vmatpush1.msra.mxu0 %v1009
    %1137 = vmatprep.subr.mxu0 0.0
    %1138 = vmatpush1.msra.mxu0 %v1008
    %1139 = vmatprep.subr.mxu0 0.0
    %1140 = vmatpush1.msra.mxu0 %v1007
    %1141 = vmatprep.subr.mxu0 0.0
    %1142 = vmatpush1.msra.mxu0 %v1006
    %1143 = vmatprep.subr.mxu0 0.0
    %1144 = vmatpush1.msra.mxu0 %v1005
    %1145 = vmatprep.subr.mxu0 0.0
    %1146 = vmatpush2.msra.mxu0 %v1036
    %1147 = vmatprep.subr.mxu0 0.0
    %1148 = vmatpush2.msra.mxu0 %v1035
    %1149 = vmatprep.subr.mxu0 0.0
    %1150 = vmatpush2.msra.mxu0 %v1034
    %1151 = vmatprep.subr.mxu0 0.0
    %1152 = vmatpush2.msra.mxu0 %v1033
    %1153 = vmatprep.subr.mxu0 0.0
    %1154 = vmatpush2.msra.mxu0 %v1032
    %1155 = vmatprep.subr.mxu0 0.0
    %1156 = vmatpush2.msra.mxu0 %v1031
    %1157 = vmatprep.subr.mxu0 0.0
    %1158 = vmatpush2.msra.mxu0 %v1030
    %1159 = vmatprep.subr.mxu0 0.0
    %1160 = vmatpush2.msra.mxu0 %v1029
    %1161 = vmatprep.subr.mxu0 0.0
    %1162 = vmatpush2.msra.mxu0 %v1028
    %1163 = vmatprep.subr.mxu0 0.0
    %1164 = vmatpush2.msra.mxu0 %v1027
    %1165 = vmatprep.subr.mxu0 0.0
    %1166 = vmatpush2.msra.mxu0 %v1026
    %1167 = vmatprep.subr.mxu0 0.0
    %1168 = vmatpush2.msra.mxu0 %v1025
    %1169 = vmatprep.subr.mxu0 0.0
    %1170 = vmatpush2.msra.mxu0 %v1024
    %1171 = vmatprep.subr.mxu0 0.0
    %1172 = vmatpush2.msra.mxu0 %v1023
    %1173 = vmatprep.subr.mxu0 0.0
    %1174 = vmatpush2.msra.mxu0 %v1022
    %1175 = vmatprep.subr.mxu0 0.0
    %1176 = vmatpush2.msra.mxu0 %v1021
    %1177 = vmatprep.mubr.f32.mxu0 %v972
    %1178 = vmatmul.mubr.f32.gmra.mxu0 %v971
    %v1179 = vpop.f32.mrf.mxu0
    %v1180 = vadd.f32 %v1110, %v1179
    %v1181 = vpop.f32.mrf.mxu0
    %1182 = vdwg.mxu0
    %vm1183 = vcmask 15360
    %1184 = vst.msk [vmem:[%s7] sm:$0xff] %vm1183, %v1180
    // Predicated region
    $region34: #{critic_forward.1} parent=1 // pred_check
      _
    $region35: #{critic_forward.1} parent=1 // pred_check_branch
      %1186 = sbr.rel (0) target = $region37
    $region36: #{critic_forward.1} parent=1 // pred_region
      _
    $region37: #{critic_forward.1} parent=1 // pred_fallthru
      _
    // Predicated region
    $region38: #{critic_forward.1} parent=1 // pred_check
      _
    $region39: #{critic_forward.1} parent=1 // pred_check_branch
      %1188 = sbr.rel (0) target = $region41
    $region40: #{critic_forward.1} parent=1 // pred_region
      _
    $region41: #{critic_forward.1} parent=1 // pred_fallthru
      _
    %1189 = vsyncpa [#allocation3], 1

</llo_original>
